<compile_context>
chip_gen: v7x
topology: tpu7x:2x2x1
jax: 0.10.0
libtpu: 0.0.40
codegen_flags: <defaults>
</compile_context>

<pallas_src>
import functools

import jax
import jax.numpy as jnp
from jax.experimental import pallas as pl
from jax.experimental.pallas import tpu as pltpu


def _convblock_kernel(p_ref, w_ref, b_ref, o_ref):
    """One (image, spatial-tile) block.

    p_ref: [1, Kp, THW]    im2col patches (K = KH*KW*C_in, zero-padded to Kp)
    w_ref: [C_out, Kp]     reshaped conv weight
    b_ref: [C_out, 1]      bias
    o_ref: [1, C_out, THW] output tile (spatial on the lane axis)
    """
    # Single fused MXU matmul: spatial (THW) on lanes, f32 accumulation.
    acc = jnp.dot(w_ref[...], p_ref[0], preferred_element_type=jnp.float32)
    acc = acc + b_ref[...]           # bias  (f32 epilogue)
    acc = jnp.maximum(acc, 0.0)      # ReLU  (activ='relu'); norm='none' -> Identity
    o_ref[0] = acc.astype(o_ref.dtype)


def _pick_hw_tile(hw, cap=2048):
    """Largest lane tile <= cap that divides hw and is a multiple of 128, else full hw."""
    if hw <= cap:
        return hw
    for t in range(cap - cap % 128, 0, -128):
        if hw % t == 0:
            return t
    return hw


@functools.partial(jax.jit, static_argnames=("padding", "mxu_dtype"))
def conv_block_forward(x_nchw, weight_oihw, bias, *, padding=1, mxu_dtype=None):
    """ConvBlock forward: Conv2d(3x3, stride 1, pad=padding) + Identity norm + ReLU.

    x_nchw:      [N, C_in, H, W]        (PyTorch layout, kept end-to-end)
    weight_oihw: [C_out, C_in, KH, KW]  (PyTorch Conv2d weight layout)
    bias:        [C_out]
    mxu_dtype:   optional MXU input dtype (e.g. jnp.bfloat16 on v6e/v7x);
                 accumulation and epilogue stay f32.
    returns:     [N, C_out, H_out, W_out]
    """
    N, C_in, H, W = x_nchw.shape
    C_out, _, KH, KW = weight_oihw.shape
    H_out = H + 2 * padding - KH + 1
    W_out = W + 2 * padding - KW + 1
    HW = H_out * W_out

    # --- im2col in the jitted wrapper: no shifted slices inside the kernel. ---
    xp = jnp.pad(x_nchw, ((0, 0), (0, 0), (padding, padding), (padding, padding)))
    taps = [xp[:, :, kh:kh + H_out, kw:kw + W_out]            # each [N, C_in, H_out, W_out]
            for kh in range(KH) for kw in range(KW)]
    patches = jnp.stack(taps, axis=1).reshape(N, KH * KW * C_in, HW)

    # Weight -> [C_out, (kh, kw, c_in)] to match the patches' K ordering.
    w2d = jnp.transpose(weight_oihw, (0, 2, 3, 1)).reshape(C_out, KH * KW * C_in)
    b2d = bias.reshape(C_out, 1).astype(jnp.float32)

    # Pad the contraction dim to a sublane multiple (zeros don't change the result).
    K = KH * KW * C_in
    K_pad = -(-K // 8) * 8
    if K_pad != K:
        patches = jnp.pad(patches, ((0, 0), (0, K_pad - K), (0, 0)))
        w2d = jnp.pad(w2d, ((0, 0), (0, K_pad - K)))

    if mxu_dtype is not None:        # bf16 MXU inputs on v6e/v7x (f32 accumulation kept)
        patches = patches.astype(mxu_dtype)
        w2d = w2d.astype(mxu_dtype)

    thw = _pick_hw_tile(HW)
    grid = (N, HW // thw)

    out2d = pl.pallas_call(
        _convblock_kernel,
        out_shape=jax.ShapeDtypeStruct((N, C_out, HW), x_nchw.dtype),
        grid_spec=pltpu.PrefetchScalarGridSpec(
            num_scalar_prefetch=0,
            grid=grid,
            in_specs=[
                pl.BlockSpec((1, K_pad, thw), lambda n, j: (n, 0, j)),
                pl.BlockSpec((C_out, K_pad), lambda n, j: (0, 0)),
                pl.BlockSpec((C_out, 1), lambda n, j: (0, 0)),
            ],
            out_specs=pl.BlockSpec((1, C_out, thw), lambda n, j: (n, 0, j)),
        ),
        compiler_params=pltpu.CompilerParams(
            dimension_semantics=("parallel", "parallel"),
            vmem_limit_bytes=32 * 1024 * 1024,  # tiles sized so they also fit v7x VMEM
        ),
    )(patches, w2d, b2d)

    # [N, C_out, H*W] -> [N, C_out, H, W]: pure reshape, no transpose.
    return out2d.reshape(N, C_out, H_out, W_out)


# TODO(synk): only the module's default-config forward path is implemented
# (norm='none', activ='relu', stride=1, no up/downsample, no spectral_norm).


def _reference_forward(x_nchw, weight_oihw, bias, *, padding=1):
    """Pure-JAX reference (lax conv) for correctness checking."""
    out = jax.lax.conv_general_dilated(
        x_nchw, weight_oihw,
        window_strides=(1, 1),
        padding=((padding, padding), (padding, padding)),
        dimension_numbers=("NCHW", "OIHW", "NCHW"),
    )
    out = out + bias.reshape(1, -1, 1, 1)
    return jnp.maximum(out, 0.0)


if __name__ == "__main__":
    # Small shapes consistent with the module's default forward.
    N, C_in, C_out, H, W, K = 2, 4, 8, 16, 16, 3

    key = jax.random.PRNGKey(0)
    kx, kw, kb = jax.random.split(key, 3)

    x = jax.random.normal(kx, (N, C_in, H, W), dtype=jnp.float32)
    fan_in = C_in * K * K
    weight = jax.random.normal(kw, (C_out, C_in, K, K), dtype=jnp.float32) * (2.0 / fan_in) ** 0.5
    bias = 0.01 * jax.random.normal(kb, (C_out,), dtype=jnp.float32)

    out = conv_block_forward(x, weight, bias, padding=1)
    out = jax.block_until_ready(out)

    ref = _reference_forward(x, weight, bias, padding=1)
    assert out.shape == (N, C_out, H, W), out.shape
    assert jnp.allclose(out, ref, atol=1e-4, rtol=1e-4), float(jnp.max(jnp.abs(out - ref)))

    print("KERNEL_OK")
</pallas_src>

<mosaic_0001>
module attributes {stable_mosaic.version = 11 : i64} {
  func.func @_convblock_kernel(%arg0: i32, %arg1: i32, %arg2: memref<1x40x256xf32, #tpu.memory_space<vmem>>, %arg3: memref<8x40xf32, #tpu.memory_space<vmem>>, %arg4: memref<8x1xf32, #tpu.memory_space<vmem>>, %arg5: memref<1x8x256xf32, #tpu.memory_space<vmem>>) attributes {dimension_semantics = [#tpu.dimension_semantics<parallel>, #tpu.dimension_semantics<parallel>], iteration_bounds = array<i64: 2, 1>, scalar_prefetch = 0 : i64, scratch_operands = 0 : i64, tpu.core_type = #tpu.core_type<tc>, window_params = [{transform_indices = @transform_0, window_bounds = array<i64: 1, 40, 256>}, {pipeline_mode = #tpu.pipeline_mode<synchronous>, transform_indices = @transform_1, window_bounds = array<i64: 8, 40>}, {pipeline_mode = #tpu.pipeline_mode<synchronous>, transform_indices = @transform_2, window_bounds = array<i64: 8, 1>}, {transform_indices = @transform_3, window_bounds = array<i64: 1, 8, 256>}]} {
    %c0 = arith.constant 0 : index
    %c0_0 = arith.constant 0 : index
    %0 = vector.load %arg3[%c0, %c0_0] : memref<8x40xf32, #tpu.memory_space<vmem>>, vector<8x40xf32>
    %c0_1 = arith.constant 0 : index
    %c0_2 = arith.constant 0 : index
    %c0_3 = arith.constant 0 : index
    %1 = vector.load %arg2[%c0_1, %c0_2, %c0_3] : memref<1x40x256xf32, #tpu.memory_space<vmem>>, vector<1x40x256xf32>
    %2 = vector.shape_cast %1 : vector<1x40x256xf32> to vector<40x256xf32>
    %cst = arith.constant dense<0.000000e+00> : vector<8x256xf32>
    %3 = tpu.matmul %0, %2, %cst {dimension_numbers = #tpu.dot_dimension_numbers<[1], [0], [0], [1], [0, 0, 1, 1], [], []>} : vector<8x40xf32>, vector<40x256xf32>, vector<8x256xf32> -> vector<8x256xf32>
    %c0_4 = arith.constant 0 : index
    %c0_5 = arith.constant 0 : index
    %4 = vector.load %arg4[%c0_4, %c0_5] : memref<8x1xf32, #tpu.memory_space<vmem>>, vector<8x1xf32>
    %5 = vector.broadcast %4 : vector<8x1xf32> to vector<8x256xf32>
    %6 = arith.addf %3, %5 : vector<8x256xf32>
    %cst_6 = arith.constant 0.000000e+00 : f32
    %7 = vector.broadcast %cst_6 : f32 to vector<8x256xf32>
    %8 = arith.maximumf %6, %7 : vector<8x256xf32>
    %c0_7 = arith.constant 0 : index
    %c0_8 = arith.constant 0 : index
    %c0_9 = arith.constant 0 : index
    %9 = vector.load %arg5[%c0_7, %c0_8, %c0_9] : memref<1x8x256xf32, #tpu.memory_space<vmem>>, vector<1x8x256xf32>
    %10 = vector.shape_cast %9 : vector<1x8x256xf32> to vector<8x256xf32>
    %11 = vector.shape_cast %8 : vector<8x256xf32> to vector<1x8x256xf32>
    tpu.vector_store %arg5[%c0_7, %c0_8, %c0_9], %11 {strides = array<i32>} : memref<1x8x256xf32, #tpu.memory_space<vmem>>, vector<1x8x256xf32>,
    return
  }
  func.func @transform_0(%arg0: i32, %arg1: i32) -> (i32, i32, i32) {
    %c0_i32 = arith.constant 0 : i32
    %c0_i32_0 = arith.constant 0 : i32
    return %arg0, %c0_i32, %arg1 : i32, i32, i32
  }
  func.func @transform_1(%arg0: i32, %arg1: i32) -> (i32, i32) {
    %c0_i32 = arith.constant 0 : i32
    %c0_i32_0 = arith.constant 0 : i32
    %c0_i32_1 = arith.constant 0 : i32
    return %c0_i32, %c0_i32_0 : i32, i32
  }
  func.func @transform_2(%arg0: i32, %arg1: i32) -> (i32, i32) {
    %c0_i32 = arith.constant 0 : i32
    %c0_i32_0 = arith.constant 0 : i32
    %c0_i32_1 = arith.constant 0 : i32
    return %c0_i32, %c0_i32_0 : i32, i32
  }
  func.func @transform_3(%arg0: i32, %arg1: i32) -> (i32, i32, i32) {
    %c0_i32 = arith.constant 0 : i32
    %c0_i32_0 = arith.constant 0 : i32
    return %arg0, %c0_i32, %arg1 : i32, i32, i32
  }
}

</mosaic_0001>

<llo_original>
// kernel: conv_block_forward.1
$region0: #{conv_block_forward.1}
  #allocation0 [shape = 'u32[]', space=smem, size = 0x4, offset = 0x4, fixed_abs, tag = 'smem constant byte address 0x4 - core index']
  #allocation1 [shape = 'u32[144,128]{1,0:T(1,128)}', space=vmem, size = 0x12000, scoped, tag = 'internal scratch']
  %s0 = inlined_call_operand.vmem [shape: f32[2,40,256], index: 0, kind: input, shape index: {}]
  %s1 = inlined_call_operand.vmem [shape: f32[8,40], index: 1, kind: input, shape index: {}]
  %s2 = inlined_call_operand.vmem [shape: f32[8,1], index: 2, kind: input, shape index: {}]
  %s3 = inlined_call_operand.vmem [shape: f32[2,8,256], index: 3, kind: output, shape index: {}]
  %s4 = sld [smem:[#allocation0]]
  $region45: #{conv_block_forward.1} parent=0
    _
  %s6 = ssub.s32 1, %s4
  %s7 = scalar_select 0, %s6, %s4
  loop: start=0, step=1, limit=4
  $region2: #{conv_block_forward.1} parent=0 // loop_pre_header
    _
  $region3: #{conv_block_forward.1} parent=0 // loop_header
    %s9 = sphi 0, %s13
    %p10 = scmp.ge.s32.totalorder %s9, 4
    %s16 = sphi 0, %s28
    %s17 = sphi 0, %s24
    %s18 = sphi 0, %s16
    %s19 = sphi 0, %s17
    %s20 = sphi 0, %s18
    %s21 = sphi 0, %s19
    %s33 = sphi 0, %s35
    %s36 = sphi 0, %s33
    %s37 = sphi 0, %s36
    %s53 = sphi 0, %s37
    %s57 = sphi 0, %s57
    %s59 = sphi 0, %s57
    %s60 = sphi 0, %s59
    %s74 = sphi 0, %s60
    %s78 = sphi 0, %s78
    %s80 = sphi 0, %s78
    %s81 = sphi 0, %s80
    %s95 = sphi 0, %s81
    %s103 = sphi 0, %s105
    %s106 = sphi 0, %s103
    %s107 = sphi 0, %s106
    %s123 = sphi 0, %s107
  $region4: #{conv_block_forward.1} parent=0 // loop_header_branch
    %12 = sbr.rel (%p10) target = $region8
  $region5: #{conv_block_forward.1} parent=0 // loop_body
    %s14 = ssub.s32 %s9, 1
    %s15 = ssub.s32 %s9, 2
    %s22 = sadd.s32 1, %s17
    %p23 = scmp.ge.s32.totalorder %s22, 1
    %s24 = scalar_select %p23, 0, %s22
    %s25 = sadd.s32 1, %s16
    %s26 = scalar_select %p23, %s25, %s16
    %p27 = scmp.ge.s32.totalorder %s26, 2
    %s28 = scalar_select %p27, 0, %s26
    %s29 = ssub.s32 %s16, %s28
    %s30 = ssub.s32 %s17, %s24
    %s31 = sor.u32 %s29, %s30
    %p32 = scmp.eq.s32.totalorder %s31, 0
    %s34 = sadd.s32 %s33, 1
    %s35 = scalar_select %p32, %s33, %s34
    %p38 = pneg %p32
    %p39 = scmp.eq.s32.totalorder %s9, 1
    %p40 = por %p38, %p39
    %p41 = scmp.ne.s32.totalorder %s33, %s36
    %p42 = scmp.eq.s32.totalorder %s9, 0
    %p43 = por %p41, %p42
    %p44 = scmp.ne.s32.totalorder %s33, %s36
    %p45 = scmp.eq.s32.totalorder %s14, 1
    %p46 = por %p44, %p45
    %p47 = scmp.ne.s32.totalorder %s36, %s37
    %p48 = scmp.eq.s32.totalorder %s14, 0
    %p49 = por %p47, %p48
    %p50 = scmp.ne.s32.totalorder %s36, %s37
    %p51 = scmp.eq.s32.totalorder %s15, 1
    %p52 = por %p50, %p51
    %p54 = scmp.ne.s32.totalorder %s37, %s53
    %p55 = scmp.eq.s32.totalorder %s15, 0
    %p56 = por %p54, %p55
    %s58 = sadd.s32 %s57, 1
    %p61 = scmp.eq.s32.totalorder %s9, 1
    %p62 = scmp.ne.s32.totalorder %s57, %s59
    %p63 = scmp.eq.s32.totalorder %s9, 0
    %p64 = por %p62, %p63
    %p65 = scmp.ne.s32.totalorder %s57, %s59
    %p66 = scmp.eq.s32.totalorder %s14, 1
    %p67 = por %p65, %p66
    %p68 = scmp.ne.s32.totalorder %s59, %s60
    %p69 = scmp.eq.s32.totalorder %s14, 0
    %p70 = por %p68, %p69
    %p71 = scmp.ne.s32.totalorder %s59, %s60
    %p72 = scmp.eq.s32.totalorder %s15, 1
    %p73 = por %p71, %p72
    %p75 = scmp.ne.s32.totalorder %s60, %s74
    %p76 = scmp.eq.s32.totalorder %s15, 0
    %p77 = por %p75, %p76
    %s79 = sadd.s32 %s78, 1
    %p82 = scmp.eq.s32.totalorder %s9, 1
    %p83 = scmp.ne.s32.totalorder %s78, %s80
    %p84 = scmp.eq.s32.totalorder %s9, 0
    %p85 = por %p83, %p84
    %p86 = scmp.ne.s32.totalorder %s78, %s80
    %p87 = scmp.eq.s32.totalorder %s14, 1
    %p88 = por %p86, %p87
    %p89 = scmp.ne.s32.totalorder %s80, %s81
    %p90 = scmp.eq.s32.totalorder %s14, 0
    %p91 = por %p89, %p90
    %p92 = scmp.ne.s32.totalorder %s80, %s81
    %p93 = scmp.eq.s32.totalorder %s15, 1
    %p94 = por %p92, %p93
    %p96 = scmp.ne.s32.totalorder %s81, %s95
    %p97 = scmp.eq.s32.totalorder %s15, 0
    %p98 = por %p96, %p97
    %s99 = ssub.s32 %s16, %s28
    %s100 = ssub.s32 %s17, %s24
    %s101 = sor.u32 %s99, %s100
    %p102 = scmp.eq.s32.totalorder %s101, 0
    %s104 = sadd.s32 %s103, 1
    %s105 = scalar_select %p102, %s103, %s104
    %p108 = pneg %p102
    %p109 = scmp.eq.s32.totalorder %s9, 1
    %p110 = por %p108, %p109
    %p111 = scmp.ne.s32.totalorder %s103, %s106
    %p112 = scmp.eq.s32.totalorder %s9, 0
    %p113 = por %p111, %p112
    %p114 = scmp.ne.s32.totalorder %s103, %s106
    %p115 = scmp.eq.s32.totalorder %s14, 1
    %p116 = por %p114, %p115
    %p117 = scmp.ne.s32.totalorder %s106, %s107
    %p118 = scmp.eq.s32.totalorder %s14, 0
    %p119 = por %p117, %p118
    %p120 = scmp.ne.s32.totalorder %s106, %s107
    %p121 = scmp.eq.s32.totalorder %s15, 1
    %p122 = por %p120, %p121
    %p124 = scmp.ne.s32.totalorder %s107, %s123
    %p125 = scmp.eq.s32.totalorder %s15, 0
    %p126 = por %p124, %p125
    %p127 = scmp.le.s32.totalorder 1, %s9
    %p128 = scmp.lt.s32.totalorder %s9, 3
    %p129 = pnand %p127, %p128
    %p130 = pneg %p129
    // Predicated region
    $region9: #{conv_block_forward.1} parent=5 // pred_check
      _
    $region10: #{conv_block_forward.1} parent=5 // pred_check_branch
      %132 = sbr.rel (%p129) target = $region12
    $region11: #{conv_block_forward.1} parent=5 // pred_region
      %s133 = ssub.s32 %s9, 1
      // Predicated region
      $region13: #{conv_block_forward.1} parent=11 // pred_check
        %p134 = pneg %p70
      $region14: #{conv_block_forward.1} parent=11 // pred_check_branch
        %136 = sbr.rel (%p134) target = $region16
      $region15: #{conv_block_forward.1} parent=11 // pred_region
        _
      $region16: #{conv_block_forward.1} parent=11 // pred_fallthru
        _
      // Predicated region
      $region17: #{conv_block_forward.1} parent=11 // pred_check
        %p137 = pneg %p91
      $region18: #{conv_block_forward.1} parent=11 // pred_check_branch
        %139 = sbr.rel (%p137) target = $region20
      $region19: #{conv_block_forward.1} parent=11 // pred_region
        _
      $region20: #{conv_block_forward.1} parent=11 // pred_fallthru
        _
    $region12: #{conv_block_forward.1} parent=5 // pred_fallthru
      _
    %p140 = scmp.lt.s32.totalorder %s9, 2
    // Predicated region
    $region21: #{conv_block_forward.1} parent=5 // pred_check
      %p141 = pneg %p140
    $region22: #{conv_block_forward.1} parent=5 // pred_check_branch
      %143 = sbr.rel (%p141) target = $region24
    $region23: #{conv_block_forward.1} parent=5 // pred_region
      // Predicated region
      $region25: #{conv_block_forward.1} parent=23 // pred_check
        %p144 = pneg %p43
      $region26: #{conv_block_forward.1} parent=23 // pred_check_branch
        %146 = sbr.rel (%p144) target = $region28
      $region27: #{conv_block_forward.1} parent=23 // pred_region
        %s147 = smul.u32 2, %s17
        %p148 = scmp.lt.s32.totalorder %s16, 1
        %s149 = scalar_select %p148, %s16, 1
        %p150 = scmp.lt.s32.totalorder %s147, 1
        %s151 = scalar_select %p150, %s147, 1
        %s152 = smul.addr %s149, 10
        %s153 = sadd.s32 %s151, %s152
        %s154 = smul.addr %s153, 8
        %s155 = scalar_lea.vmem %s0, %s154
        %s156 = smul.u32 2, %s17
      $region28: #{conv_block_forward.1} parent=23 // pred_fallthru
        _
    $region24: #{conv_block_forward.1} parent=5 // pred_fallthru
      _
    %p157 = scmp.le.s32.totalorder 1, %s9
    %p158 = scmp.lt.s32.totalorder %s9, 3
    %p159 = pnand %p157, %p158
    %p160 = pneg %p159
    // Predicated region
    $region29: #{conv_block_forward.1} parent=5 // pred_check
      _
    $region30: #{conv_block_forward.1} parent=5 // pred_check_branch
      %162 = sbr.rel (%p159) target = $region32
    $region31: #{conv_block_forward.1} parent=5 // pred_region
      %s163 = ssub.s32 %s9, 1
      %s164 = smul.u32 2, %s19
      %p165 = scmp.lt.s32.totalorder %s18, 1
      %s166 = scalar_select %p165, %s18, 1
      %p167 = scmp.lt.s32.totalorder %s164, 1
      %s168 = scalar_select %p167, %s164, 1
      %s169 = smul.addr %s166, 10
      %s170 = sadd.s32 %s168, %s169
      %s171 = smul.addr %s170, 8
      %s172 = scalar_lea.vmem %s0, %s171
      %p173 = pneg %p49
      %p174 = pneg %p46
      %p175 = pneg %p70
      %p176 = pneg %p67
      %p177 = pneg %p91
      %p178 = pneg %p88
      %p179 = pneg %p119
      %p180 = pneg %p116
      %s181 = smul.u32 2, %s19
      %p182 = scmp.lt.s32.totalorder %s18, 1
      %s183 = scalar_select %p182, %s18, 1
      %p184 = scmp.lt.s32.totalorder %s181, 1
      %s185 = scalar_select %p184, %s181, 1
      %s186 = smul.addr %s183, 2
      %s187 = sadd.s32 %s185, %s186
      %s188 = smul.addr %s187, 8
      %s189 = scalar_lea.vmem %s3, %s188
      %s190 = smul.u32 2, %s19
      %p191 = scmp.lt.s32.totalorder %s18, 1
      %s192 = scalar_select %p191, %s18, 1
      %p193 = scmp.lt.s32.totalorder %s190, 1
      %s194 = scalar_select %p193, %s190, 1
      %s195 = smul.addr %s192, 10
      %s196 = sadd.s32 %s194, %s195
      %s197 = smul.addr %s196, 8
      %s198 = scalar_lea.vmem %s0, %s197
      %s199 = smul.u32 2, %s19
      %s200 = smul.u32 2, %s19
      %p201 = scmp.lt.s32.totalorder %s18, 1
      %s202 = scalar_select %p201, %s18, 1
      %p203 = scmp.lt.s32.totalorder %s200, 1
      %s204 = scalar_select %p203, %s200, 1
      %s205 = smul.addr %s202, 2
      %s206 = sadd.s32 %s204, %s205
      %s207 = smul.addr %s206, 8
      %s208 = scalar_lea.vmem %s3, %s207
      %s209 = smul.u32 2, %s19
      %v210 = vld [vmem:[%s1] sm:$0xff]
      %v211 = vld [vmem:[%s198] sm:$0xff]
      %v212 = vld [vmem:[%s198 + $0x8] sm:$0xff]
      %v213 = vld [vmem:[%s198 + $0x10] sm:$0xff]
      %v214 = vld [vmem:[%s198 + $0x18] sm:$0xff]
      %v215 = vld [vmem:[%s198 + $0x20] sm:$0xff]
      %v216 = vld [vmem:[%s198 + $0x28] sm:$0xff]
      %v217 = vld [vmem:[%s198 + $0x30] sm:$0xff]
      %v218 = vld [vmem:[%s198 + $0x38] sm:$0xff]
      %v219 = vld [vmem:[%s198 + $0x40] sm:$0xff]
      %v220 = vld [vmem:[%s198 + $0x48] sm:$0xff]
      %v221 = vld [vmem:[%s2] sm:$0xff]
      %223 = vset.pattern.permute.xlu0 0
      %224 = vperm.xlu0 %223, %v221
      %v225 = vpop.permute.xlu0 %224
      %vm227 = vcmask 326656
      %v229 = vsel %vm227, %v210, 0
      %231 = vmatprep.subr.mxu0 %v212
      %232 = vmatpush1.msra.mxu0 %v211
      %233 = vmatprep.subr.mxu0 %v214
      %234 = vmatpush1.msra.mxu0 %v213
      %235 = vmatprep.subr.mxu0 %v216
      %236 = vmatpush1.msra.mxu0 %v215
      %237 = vmatprep.subr.mxu0 %v218
      %238 = vmatpush1.msra.mxu0 %v217
      %239 = vmatprep.subr.mxu0 %v220
      %240 = vmatpush1.msra.mxu0 %v219
      %241 = vmatprep.subr.mxu0 0.0
      %242 = vmatpush1.msra.mxu0 0.0
      %243 = vmatprep.subr.mxu0 0.0
      %244 = vmatpush1.msra.mxu0 0.0
      %245 = vmatprep.subr.mxu0 0.0
      %246 = vmatpush1.msra.mxu0 0.0
      %247 = vmatprep.subr.mxu0 0.0
      %248 = vmatpush1.msra.mxu0 0.0
      %249 = vmatprep.subr.mxu0 0.0
      %250 = vmatpush1.msra.mxu0 0.0
      %251 = vmatprep.subr.mxu0 0.0
      %252 = vmatpush1.msra.mxu0 0.0
      %253 = vmatprep.subr.mxu0 0.0
      %254 = vmatpush1.msra.mxu0 0.0
      %255 = vmatprep.subr.mxu0 0.0
      %256 = vmatpush1.msra.mxu0 0.0
      %257 = vmatprep.subr.mxu0 0.0
      %258 = vmatpush1.msra.mxu0 0.0
      %259 = vmatprep.subr.mxu0 0.0
      %260 = vmatpush1.msra.mxu0 0.0
      %261 = vmatprep.subr.mxu0 0.0
      %262 = vmatpush1.msra.mxu0 0.0
      %263 = vmatprep.subr.mxu0 0.0
      %264 = vmatpush1.msra.mxu0 0.0
      %265 = vmatprep.subr.mxu0 0.0
      %266 = vmatpush1.msra.mxu0 0.0
      %267 = vmatprep.subr.mxu0 0.0
      %268 = vmatpush1.msra.mxu0 0.0
      %269 = vmatprep.subr.mxu0 0.0
      %270 = vmatpush1.msra.mxu0 0.0
      %271 = vmatprep.subr.mxu0 0.0
      %272 = vmatpush1.msra.mxu0 0.0
      %273 = vmatprep.subr.mxu0 0.0
      %274 = vmatpush1.msra.mxu0 0.0
      %275 = vmatprep.subr.mxu0 0.0
      %276 = vmatpush1.msra.mxu0 0.0
      %277 = vmatprep.subr.mxu0 0.0
      %278 = vmatpush1.msra.mxu0 0.0
      %279 = vmatprep.subr.mxu0 0.0
      %280 = vmatpush1.msra.mxu0 0.0
      %281 = vmatprep.subr.mxu0 0.0
      %282 = vmatpush1.msra.mxu0 0.0
      %283 = vmatprep.subr.mxu0 0.0
      %284 = vmatpush1.msra.mxu0 0.0
      %285 = vmatprep.subr.mxu0 0.0
      %286 = vmatpush1.msra.mxu0 0.0
      %287 = vmatprep.subr.mxu0 0.0
      %288 = vmatpush1.msra.mxu0 0.0
      %289 = vmatprep.subr.mxu0 0.0
      %290 = vmatpush1.msra.mxu0 0.0
      %291 = vmatprep.subr.mxu0 0.0
      %292 = vmatpush1.msra.mxu0 0.0
      %293 = vmatprep.subr.mxu0 0.0
      %294 = vmatpush1.msra.mxu0 0.0
      %295 = vmatprep.mubr.f32.mxu0 0.0
      %296 = vmatmul.mubr.f32.gmra.mrb[0].mxu0 %v229
      %v297 = vpop.f32.mrb[0].mxu0
      %v298 = vadd.f32 %v225, %v297
      %v299 = vpop.f32.mrb[0].mxu0
      %v300 = vadd.f32 %v225, %v299
      %301 = vdwg.mxu0
      %v302 = vmax.f32 %v298, 0.0
      %v303 = vmax.f32 %v300, 0.0
      %304 = vst [vmem:[%s208] sm:$0xff] %v302
      %305 = vst [vmem:[%s208 + $0x8] sm:$0xff] %v303
      %s306 = smul.u32 2, %s19
      %p307 = scmp.lt.s32.totalorder %s18, 1
      %s308 = scalar_select %p307, %s18, 1
      %p309 = scmp.lt.s32.totalorder %s306, 1
      %s310 = scalar_select %p309, %s306, 1
      %s311 = smul.addr %s308, 2
      %s312 = sadd.s32 %s310, %s311
      %s313 = smul.addr %s312, 8
      %s314 = scalar_lea.vmem %s3, %s313
      // Predicated region
      $region33: #{conv_block_forward.1} parent=31 // pred_check
        %p315 = pneg %p116
      $region34: #{conv_block_forward.1} parent=31 // pred_check_branch
        %317 = sbr.rel (%p315) target = $region36
      $region35: #{conv_block_forward.1} parent=31 // pred_region
        %s318 = smul.u32 2, %s19
      $region36: #{conv_block_forward.1} parent=31 // pred_fallthru
        _
    $region32: #{conv_block_forward.1} parent=5 // pred_fallthru
      _
    %p319 = scmp.le.s32.totalorder 2, %s9
    // Predicated region
    $region37: #{conv_block_forward.1} parent=5 // pred_check
      %p320 = pneg %p319
    $region38: #{conv_block_forward.1} parent=5 // pred_check_branch
      %322 = sbr.rel (%p320) target = $region40
    $region39: #{conv_block_forward.1} parent=5 // pred_region
      %s323 = ssub.s32 %s9, 2
      // Predicated region
      $region41: #{conv_block_forward.1} parent=39 // pred_check
        %p324 = pneg %p122
      $region42: #{conv_block_forward.1} parent=39 // pred_check_branch
        %326 = sbr.rel (%p324) target = $region44
      $region43: #{conv_block_forward.1} parent=39 // pred_region
        %s327 = smul.u32 2, %s21
        %p328 = scmp.lt.s32.totalorder %s20, 1
        %s329 = scalar_select %p328, %s20, 1
        %p330 = scmp.lt.s32.totalorder %s327, 1
        %s331 = scalar_select %p330, %s327, 1
        %s332 = smul.addr %s329, 2
        %s333 = sadd.s32 %s331, %s332
        %s334 = smul.addr %s333, 8
        %s335 = scalar_lea.vmem %s3, %s334
      $region44: #{conv_block_forward.1} parent=39 // pred_fallthru
        _
    $region40: #{conv_block_forward.1} parent=5 // pred_fallthru
      _
  $region6: #{conv_block_forward.1} parent=0 // loop_footer
    %s13 = sadd.s32 1, %s9
  $region7: #{conv_block_forward.1} parent=0 // loop_footer_branch
    %8 = sbr.rel target = $region3
  $region8: #{conv_block_forward.1} parent=0 // loop_exit
    _

</llo_original>
